<compile_context>
chip_gen: v5e
topology: v5e:2x2
jax: 0.10.0
libtpu: 0.0.40
codegen_flags: <defaults>
</compile_context>

<pallas_src>
import functools

import jax
import jax.numpy as jnp
from jax import lax
from jax.experimental import pallas as pl
from jax.experimental.pallas import tpu as pltpu

_LANE = 128
_SUBLANE = 8


def _cdiv(a, b):
    return -(-a // b)


def _weighted_loss_kernel(*refs, weights, rows_total, rows_tile, acc_rows,
                          need_mask):
    """Accumulate sum_i w_i * (pred_i - label_i)^2 into a lane-dense accumulator.

    refs = (p_0..p_{L-1}, l_0..l_{L-1}, out_ref)
      p_i, l_i : VMEM (rows_tile, 128) tiles, native dtype
      out_ref  : VMEM (acc_rows, 128) f32 running accumulator (revisited every
                 grid step; reduced + scaled by 1/N in the wrapper).
    """
    L = len(weights)
    p_refs = refs[:L]
    l_refs = refs[L:2 * L]
    out_ref = refs[2 * L]

    k = pl.program_id(0)

    @pl.when(k == 0)
    def _():
        out_ref[...] = jnp.zeros_like(out_ref)

    if need_mask:
        # Ragged last tile: rows at or beyond `rows_total` hold unspecified
        # padding.  Remove them with a select (NOT a multiply: garbage can be
        # NaN/Inf and NaN * 0 = NaN).
        row_ids = k * rows_tile + lax.broadcasted_iota(
            jnp.int32, (rows_tile, _LANE), 0)
        valid = row_ids < rows_total

    partial = jnp.zeros((acc_rows, _LANE), jnp.float32)
    for i in range(L):  # static, tiny L
        d = p_refs[i][...].astype(jnp.float32) - l_refs[i][...].astype(jnp.float32)
        sq = d * d
        if need_mask:
            sq = jnp.where(valid, sq, 0.0)
        # Fold (rows_tile, 128) -> (acc_rows, 128) with plain vector adds; the
        # (acc_rows, 128) inner tile matches the native vreg layout so the
        # reshape is layout-free.
        folded = jnp.sum(sq.reshape(-1, acc_rows, _LANE), axis=0)
        partial = partial + jnp.float32(weights[i]) * folded
    out_ref[...] += partial


def weighted_loss(preds, labels, loss_weights=None):
    """Pallas implementation of WeightedLoss.forward (squared-error heads).

    preds, labels: lists of L arrays, all of the same shape.
    loss_weights : None | 'average' | sequence of L floats (Python constants).
    Returns scalar float32 total loss.
    """
    L = len(preds)
    assert len(labels) == L and L > 0
    shape = preds[0].shape
    for x in list(preds) + list(labels):
        assert x.shape == shape, "all loss heads must share a shape"
    n_elems = int(preds[0].size)

    # Weighting logic from WeightedLoss.forward, baked in as constants.
    if loss_weights is None:
        weights = (1.0,) * L
    elif isinstance(loss_weights, str):
        assert loss_weights == "average"
        weights = (1.0 / L,) * L
    else:
        assert len(loss_weights) == L
        weights = tuple(float(w) for w in loss_weights)

    itemsizes = [jnp.dtype(x.dtype).itemsize for x in list(preds) + list(labels)]
    min_item, max_item = min(itemsizes), max(itemsizes)
    # Native packing: 8 sublanes for 32-bit, 16 for bf16, 32 for int8/fp8.
    sublane = max(_SUBLANE, 32 // min_item)

    lane_rem = n_elems % _LANE
    rows = n_elems // _LANE + (1 if lane_rem else 0)

    # Block sizing: ~2 MiB per input block (dtype-aware), but keep all 2L
    # double-buffered input blocks under ~24 MiB so the pipeline fits every
    # generation's VMEM under the explicit limit set below.
    target_block_bytes = min(2 << 20, max(1 << 18, (24 << 20) // (4 * L)))
    max_rows_tile = max(
        sublane, (target_block_bytes // (_LANE * max_item)) // sublane * sublane)
    if rows >= sublane:
        # Round DOWN so the block never exceeds the array extent; the ragged
        # remainder lands in the (masked) last tile.
        rows_tile = min(max_rows_tile, (rows // sublane) * sublane)
    else:
        # Tiny input: one full-extent block (full-dim blocks waive the (8,128)
        # divisibility rule).
        rows_tile = rows
    num_tiles = _cdiv(rows, rows_tile)
    need_mask = (rows % rows_tile) != 0
    acc_rows = _SUBLANE if rows_tile % _SUBLANE == 0 else rows_tile

    def _prep(x):
        flat = jnp.reshape(x, (-1,))  # contiguous reshape, no copy
        if lane_rem:
            # TODO(synk): only for n_elems % 128 != 0 — sub-lane tail pad is
            # the one remaining copy (the zeros contribute 0 to the loss).
            flat = jnp.pad(flat, (0, rows * _LANE - n_elems))
        return jnp.reshape(flat, (rows, _LANE))  # lane-dense, native dtype

    inputs = [_prep(p) for p in preds] + [_prep(x) for x in labels]

    kernel = functools.partial(
        _weighted_loss_kernel, weights=weights, rows_total=rows,
        rows_tile=rows_tile, acc_rows=acc_rows, need_mask=need_mask)

    # VMEM budget: 2L inputs x 2 pipeline buffers + f32 intermediates headroom.
    block_bytes = rows_tile * _LANE * max_item
    needed = 2 * L * 2 * block_bytes + 4 * rows_tile * _LANE * 4 + (2 << 20)
    vmem_limit = int(min(max(needed, 32 << 20), 48 << 20))

    cost = pl.CostEstimate(
        flops=5 * L * n_elems,
        transcendentals=0,
        bytes_accessed=2 * L * n_elems * max_item + acc_rows * _LANE * 4)

    acc = pl.pallas_call(
        kernel,
        out_shape=jax.ShapeDtypeStruct((acc_rows, _LANE), jnp.float32),
        grid=(num_tiles,),
        in_specs=[pl.BlockSpec((rows_tile, _LANE), lambda k: (k, 0))
                  for _ in range(2 * L)],
        out_specs=pl.BlockSpec((acc_rows, _LANE), lambda k: (0, 0)),
        compiler_params=pltpu.CompilerParams(
            dimension_semantics=("arbitrary",),
            vmem_limit_bytes=vmem_limit,
        ),
        cost_estimate=cost,
    )(*inputs)

    # Single cross-lane/sublane reduction + mean scaling outside the kernel.
    return jnp.sum(acc) * (1.0 / n_elems)


def _reference(preds, labels, loss_weights):
    """Pure-JAX reference mirroring WeightedLoss.forward."""
    L = len(preds)
    if loss_weights is None:
        w = [1.0] * L
    elif isinstance(loss_weights, str):
        w = [1.0 / L] * L
    else:
        w = list(loss_weights)
    loss = 0.0
    for i in range(L):
        cur = (preds[i].astype(jnp.float32) - labels[i].astype(jnp.float32)) ** 2
        loss = loss + w[i] * cur
    return jnp.mean(loss)


if __name__ == "__main__":
    # Test 1: explicit per-head weights, lane-aligned shape.
    L, B, C, H, W = 3, 2, 4, 16, 16
    loss_weights = [0.5, 1.0, 2.0]
    keys = jax.random.split(jax.random.PRNGKey(0), 2 * L)
    preds = [jax.random.normal(keys[i], (B, C, H, W), jnp.float32)
             for i in range(L)]
    labels = [jax.random.normal(keys[L + i], (B, C, H, W), jnp.float32)
              for i in range(L)]
    total = jax.block_until_ready(weighted_loss(preds, labels, loss_weights))
    ref = _reference(preds, labels, loss_weights)
    assert jnp.allclose(total, ref, rtol=1e-5, atol=1e-5), (total, ref)

    # Test 2: 'average' weighting with a ragged shape (not a multiple of 128
    # elements, row count not a multiple of the tile) to exercise the
    # in-kernel masking path and multi-tile accumulation.
    L2 = 2
    shape2 = (2, 3, 15, 16)
    keys2 = jax.random.split(jax.random.PRNGKey(1), 2 * L2)
    preds2 = [jax.random.normal(keys2[i], shape2, jnp.float32)
              for i in range(L2)]
    labels2 = [jax.random.normal(keys2[L2 + i], shape2, jnp.float32)
               for i in range(L2)]
    total2 = jax.block_until_ready(weighted_loss(preds2, labels2, "average"))
    ref2 = _reference(preds2, labels2, "average")
    assert jnp.allclose(total2, ref2, rtol=1e-5, atol=1e-5), (total2, ref2)

    print("KERNEL_OK")
</pallas_src>

<mosaic_0001>
module attributes {stable_mosaic.version = 11 : i64} {
  func.func @_weighted_loss_kernel(%arg0: i32, %arg1: memref<16x128xf32, #tpu.memory_space<vmem>>, %arg2: memref<16x128xf32, #tpu.memory_space<vmem>>, %arg3: memref<16x128xf32, #tpu.memory_space<vmem>>, %arg4: memref<16x128xf32, #tpu.memory_space<vmem>>, %arg5: memref<16x128xf32, #tpu.memory_space<vmem>>, %arg6: memref<16x128xf32, #tpu.memory_space<vmem>>, %arg7: memref<8x128xf32, #tpu.memory_space<vmem>>) attributes {dimension_semantics = [#tpu.dimension_semantics<arbitrary>], iteration_bounds = array<i64: 1>, scalar_prefetch = 0 : i64, scratch_operands = 0 : i64, tpu.core_type = #tpu.core_type<tc>, window_params = [{transform_indices = @transform_0, window_bounds = array<i64: 16, 128>}, {transform_indices = @transform_1, window_bounds = array<i64: 16, 128>}, {transform_indices = @transform_2, window_bounds = array<i64: 16, 128>}, {transform_indices = @transform_3, window_bounds = array<i64: 16, 128>}, {transform_indices = @transform_4, window_bounds = array<i64: 16, 128>}, {transform_indices = @transform_5, window_bounds = array<i64: 16, 128>}, {pipeline_mode = #tpu.pipeline_mode<synchronous>, transform_indices = @transform_6, window_bounds = array<i64: 8, 128>}]} {
    %c0_i32 = arith.constant 0 : i32
    %0 = arith.cmpi eq, %arg0, %c0_i32 : i32
    %1 = arith.extui %0 : i1 to i32
    %c0_i32_0 = arith.constant 0 : i32
    %2 = arith.cmpi ne, %1, %c0_i32_0 : i32
    scf.if %2 {
      %cst_22 = arith.constant 0.000000e+00 : f32
      %34 = vector.broadcast %cst_22 : f32 to vector<8x128xf32>
      %c0_23 = arith.constant 0 : index
      %c0_24 = arith.constant 0 : index
      %35 = vector.load %arg7[%c0_23, %c0_24] : memref<8x128xf32, #tpu.memory_space<vmem>>, vector<8x128xf32>
      tpu.vector_store %arg7[%c0_23, %c0_24], %34 {strides = array<i32>} : memref<8x128xf32, #tpu.memory_space<vmem>>, vector<8x128xf32>,
    } else {
    }
    %cst = arith.constant 0.000000e+00 : f32
    %3 = vector.broadcast %cst : f32 to vector<8x128xf32>
    %c0 = arith.constant 0 : index
    %c0_1 = arith.constant 0 : index
    %4 = vector.load %arg1[%c0, %c0_1] : memref<16x128xf32, #tpu.memory_space<vmem>>, vector<16x128xf32>
    %c0_2 = arith.constant 0 : index
    %c0_3 = arith.constant 0 : index
    %5 = vector.load %arg4[%c0_2, %c0_3] : memref<16x128xf32, #tpu.memory_space<vmem>>, vector<16x128xf32>
    %6 = arith.subf %4, %5 : vector<16x128xf32>
    %7 = arith.mulf %6, %6 : vector<16x128xf32>
    %8 = vector.shape_cast %7 : vector<16x128xf32> to vector<2x8x128xf32>
    %cst_4 = arith.constant dense<0.000000e+00> : vector<8x128xf32>
    %9 = vector.multi_reduction <add>, %8, %cst_4 [0] : vector<2x8x128xf32> to vector<8x128xf32>
    %cst_5 = arith.constant 5.000000e-01 : f32
    %10 = vector.broadcast %cst_5 : f32 to vector<8x128xf32>
    %11 = arith.mulf %10, %9 : vector<8x128xf32>
    %12 = arith.addf %3, %11 : vector<8x128xf32>
    %c0_6 = arith.constant 0 : index
    %c0_7 = arith.constant 0 : index
    %13 = vector.load %arg2[%c0_6, %c0_7] : memref<16x128xf32, #tpu.memory_space<vmem>>, vector<16x128xf32>
    %c0_8 = arith.constant 0 : index
    %c0_9 = arith.constant 0 : index
    %14 = vector.load %arg5[%c0_8, %c0_9] : memref<16x128xf32, #tpu.memory_space<vmem>>, vector<16x128xf32>
    %15 = arith.subf %13, %14 : vector<16x128xf32>
    %16 = arith.mulf %15, %15 : vector<16x128xf32>
    %17 = vector.shape_cast %16 : vector<16x128xf32> to vector<2x8x128xf32>
    %cst_10 = arith.constant dense<0.000000e+00> : vector<8x128xf32>
    %18 = vector.multi_reduction <add>, %17, %cst_10 [0] : vector<2x8x128xf32> to vector<8x128xf32>
    %cst_11 = arith.constant 1.000000e+00 : f32
    %19 = vector.broadcast %cst_11 : f32 to vector<8x128xf32>
    %20 = arith.mulf %19, %18 : vector<8x128xf32>
    %21 = arith.addf %12, %20 : vector<8x128xf32>
    %c0_12 = arith.constant 0 : index
    %c0_13 = arith.constant 0 : index
    %22 = vector.load %arg3[%c0_12, %c0_13] : memref<16x128xf32, #tpu.memory_space<vmem>>, vector<16x128xf32>
    %c0_14 = arith.constant 0 : index
    %c0_15 = arith.constant 0 : index
    %23 = vector.load %arg6[%c0_14, %c0_15] : memref<16x128xf32, #tpu.memory_space<vmem>>, vector<16x128xf32>
    %24 = arith.subf %22, %23 : vector<16x128xf32>
    %25 = arith.mulf %24, %24 : vector<16x128xf32>
    %26 = vector.shape_cast %25 : vector<16x128xf32> to vector<2x8x128xf32>
    %cst_16 = arith.constant dense<0.000000e+00> : vector<8x128xf32>
    %27 = vector.multi_reduction <add>, %26, %cst_16 [0] : vector<2x8x128xf32> to vector<8x128xf32>
    %cst_17 = arith.constant 2.000000e+00 : f32
    %28 = vector.broadcast %cst_17 : f32 to vector<8x128xf32>
    %29 = arith.mulf %28, %27 : vector<8x128xf32>
    %30 = arith.addf %21, %29 : vector<8x128xf32>
    %c0_18 = arith.constant 0 : index
    %c0_19 = arith.constant 0 : index
    %31 = vector.load %arg7[%c0_18, %c0_19] : memref<8x128xf32, #tpu.memory_space<vmem>>, vector<8x128xf32>
    %32 = arith.addf %31, %30 : vector<8x128xf32>
    %c0_20 = arith.constant 0 : index
    %c0_21 = arith.constant 0 : index
    %33 = vector.load %arg7[%c0_20, %c0_21] : memref<8x128xf32, #tpu.memory_space<vmem>>, vector<8x128xf32>
    tpu.vector_store %arg7[%c0_20, %c0_21], %32 {strides = array<i32>} : memref<8x128xf32, #tpu.memory_space<vmem>>, vector<8x128xf32>,
    return
  }
  func.func @transform_0(%arg0: i32) -> (i32, i32) {
    %c0_i32 = arith.constant 0 : i32
    %c0_i32_0 = arith.constant 0 : i32
    return %arg0, %c0_i32 : i32, i32
  }
  func.func @transform_1(%arg0: i32) -> (i32, i32) {
    %c0_i32 = arith.constant 0 : i32
    %c0_i32_0 = arith.constant 0 : i32
    return %arg0, %c0_i32 : i32, i32
  }
  func.func @transform_2(%arg0: i32) -> (i32, i32) {
    %c0_i32 = arith.constant 0 : i32
    %c0_i32_0 = arith.constant 0 : i32
    return %arg0, %c0_i32 : i32, i32
  }
  func.func @transform_3(%arg0: i32) -> (i32, i32) {
    %c0_i32 = arith.constant 0 : i32
    %c0_i32_0 = arith.constant 0 : i32
    return %arg0, %c0_i32 : i32, i32
  }
  func.func @transform_4(%arg0: i32) -> (i32, i32) {
    %c0_i32 = arith.constant 0 : i32
    %c0_i32_0 = arith.constant 0 : i32
    return %arg0, %c0_i32 : i32, i32
  }
  func.func @transform_5(%arg0: i32) -> (i32, i32) {
    %c0_i32 = arith.constant 0 : i32
    %c0_i32_0 = arith.constant 0 : i32
    return %arg0, %c0_i32 : i32, i32
  }
  func.func @transform_6(%arg0: i32) -> (i32, i32) {
    %c0_i32 = arith.constant 0 : i32
    %c0_i32_0 = arith.constant 0 : i32
    %c0_i32_1 = arith.constant 0 : i32
    return %c0_i32, %c0_i32_0 : i32, i32
  }
}

</mosaic_0001>

<llo_original>
// kernel: tpu_custom_call.1
$region0: #{tpu_custom_call.1}
  #allocation0 [shape = 'u32[]', space=smem, size = 0x4, offset = 0x4, fixed_abs, tag = 'smem constant byte address 0x4 - core index']
  #allocation1 [shape = 'u32[72,128]{1,0:T(1,128)}', space=vmem, size = 0x9000, scoped, tag = 'internal scratch']
  %s0 = inlined_call_operand.hbm [shape: f32[16,128], index: 0, kind: input, shape index: {}]
  %s1 = inlined_call_operand.hbm [shape: f32[16,128], index: 1, kind: input, shape index: {}]
  %s2 = inlined_call_operand.hbm [shape: f32[16,128], index: 2, kind: input, shape index: {}]
  %s3 = inlined_call_operand.hbm [shape: f32[16,128], index: 3, kind: input, shape index: {}]
  %s4 = inlined_call_operand.hbm [shape: f32[16,128], index: 4, kind: input, shape index: {}]
  %s5 = inlined_call_operand.hbm [shape: f32[16,128], index: 5, kind: input, shape index: {}]
  %s6 = inlined_call_operand.hbm [shape: f32[8,128], index: 6, kind: output, shape index: {}]
  %s7 = sld [smem:[#allocation0]]
  $region62: #{tpu_custom_call.1} parent=0
    _
  %s9 = ssub.s32 1, %s7
  %s10 = scalar_select 0, %s9, %s7
  $region1: #{tpu_custom_call.1} parent=0
    #allocation2 [shape = 'u8[8192]{0}', space=vmem, size = 0x2000, scoped, tag = 'input window, operand 0, single buffered']
    #allocation3 [shape = 's32[1]{0}', space=sflag, size = 0x4, scoped, tag = 'scoped memory for tpu_custom_call.1']
    #allocation4 [shape = 's32[1]{0}', space=sflag, size = 0x4, scoped, tag = 'scoped memory for tpu_custom_call.1']
    #allocation5 [shape = 'u8[8192]{0}', space=vmem, size = 0x2000, scoped, tag = 'input window, operand 1, single buffered']
    #allocation6 [shape = 's32[1]{0}', space=sflag, size = 0x4, scoped, tag = 'scoped memory for tpu_custom_call.1']
    #allocation7 [shape = 'u8[8192]{0}', space=vmem, size = 0x2000, scoped, tag = 'input window, operand 2, single buffered']
    #allocation8 [shape = 'u8[8192]{0}', space=vmem, size = 0x2000, scoped, tag = 'input window, operand 3, single buffered']
    #allocation9 [shape = 's32[1]{0}', space=sflag, size = 0x4, scoped, tag = 'scoped memory for tpu_custom_call.1']
    #allocation10 [shape = 'u8[8192]{0}', space=vmem, size = 0x2000, scoped, tag = 'input window, operand 4, single buffered']
    #allocation11 [shape = 'u8[8192]{0}', space=vmem, size = 0x2000, scoped, tag = 'input window, operand 5, single buffered']
    #allocation12 [shape = 's32[1]{0}', space=sflag, size = 0x4, scoped, tag = 'scoped memory for tpu_custom_call.1']
    #allocation13 [shape = 'u8[4096]{0}', space=vmem, size = 0x1000, scoped, tag = 'output window, operand 0, single buffered']
    %11 = vsyncpa [#allocation3], 0
    %12 = vsyncpa [#allocation6], 0
    %13 = vsyncpa [#allocation9], 0
    %14 = vsyncpa [#allocation12], 0
    %15 = vsyncpa [#allocation4], 0
    // Predicated region
    $region2: #{tpu_custom_call.1} parent=1 // pred_check
      _
    $region3: #{tpu_custom_call.1} parent=1 // pred_check_branch
      %17 = sbr.rel (0) target = $region5
    $region4: #{tpu_custom_call.1} parent=1 // pred_region
      %19 = vsyncadd [#allocation3], 0
      %s20 = sshll.u32 %s0, 4
      %s21 = int_to_ptr.hbm [resolvable:$true] %s20
      %s22 = sshll.u32 [#allocation2], 4
      %s23 = int_to_ptr.vmem [resolvable:$true] %s22
      %28 = dma.hbm_to_vmem [thread:$0]  %s21, 256, %s23, [#allocation3], 128, 128, 8
    $region5: #{tpu_custom_call.1} parent=1 // pred_fallthru
      _
    // Predicated region
    $region6: #{tpu_custom_call.1} parent=1 // pred_check
      _
    $region7: #{tpu_custom_call.1} parent=1 // pred_check_branch
      %30 = sbr.rel (0) target = $region9
    $region8: #{tpu_custom_call.1} parent=1 // pred_region
      %32 = vsyncadd [#allocation6], 0
      %s33 = sshll.u32 %s1, 4
      %s34 = int_to_ptr.hbm [resolvable:$true] %s33
      %s35 = sshll.u32 [#allocation5], 4
      %s36 = int_to_ptr.vmem [resolvable:$true] %s35
      %41 = dma.hbm_to_vmem [thread:$0]  %s34, 256, %s36, [#allocation6], 128, 128, 8
    $region9: #{tpu_custom_call.1} parent=1 // pred_fallthru
      _
    // Predicated region
    $region10: #{tpu_custom_call.1} parent=1 // pred_check
      _
    $region11: #{tpu_custom_call.1} parent=1 // pred_check_branch
      %43 = sbr.rel (0) target = $region13
    $region12: #{tpu_custom_call.1} parent=1 // pred_region
      %45 = vsyncadd [#allocation6], 0
      %s46 = sshll.u32 %s2, 4
      %s47 = int_to_ptr.hbm [resolvable:$true] %s46
      %s48 = sshll.u32 [#allocation7], 4
      %s49 = int_to_ptr.vmem [resolvable:$true] %s48
      %54 = dma.hbm_to_vmem [thread:$0]  %s47, 256, %s49, [#allocation6], 128, 128, 8
    $region13: #{tpu_custom_call.1} parent=1 // pred_fallthru
      _
    // Predicated region
    $region14: #{tpu_custom_call.1} parent=1 // pred_check
      _
    $region15: #{tpu_custom_call.1} parent=1 // pred_check_branch
      %56 = sbr.rel (0) target = $region17
    $region16: #{tpu_custom_call.1} parent=1 // pred_region
      %58 = vsyncadd [#allocation9], 0
      %s59 = sshll.u32 %s3, 4
      %s60 = int_to_ptr.hbm [resolvable:$true] %s59
      %s61 = sshll.u32 [#allocation8], 4
      %s62 = int_to_ptr.vmem [resolvable:$true] %s61
      %67 = dma.hbm_to_vmem [thread:$0]  %s60, 256, %s62, [#allocation9], 128, 128, 8
    $region17: #{tpu_custom_call.1} parent=1 // pred_fallthru
      _
    // Predicated region
    $region18: #{tpu_custom_call.1} parent=1 // pred_check
      _
    $region19: #{tpu_custom_call.1} parent=1 // pred_check_branch
      %69 = sbr.rel (0) target = $region21
    $region20: #{tpu_custom_call.1} parent=1 // pred_region
      %71 = vsyncadd [#allocation9], 0
      %s72 = sshll.u32 %s4, 4
      %s73 = int_to_ptr.hbm [resolvable:$true] %s72
      %s74 = sshll.u32 [#allocation10], 4
      %s75 = int_to_ptr.vmem [resolvable:$true] %s74
      %80 = dma.hbm_to_vmem [thread:$0]  %s73, 256, %s75, [#allocation9], 128, 128, 8
    $region21: #{tpu_custom_call.1} parent=1 // pred_fallthru
      _
    // Predicated region
    $region22: #{tpu_custom_call.1} parent=1 // pred_check
      _
    $region23: #{tpu_custom_call.1} parent=1 // pred_check_branch
      %82 = sbr.rel (0) target = $region25
    $region24: #{tpu_custom_call.1} parent=1 // pred_region
      %84 = vsyncadd [#allocation12], 0
      %s85 = sshll.u32 %s5, 4
      %s86 = int_to_ptr.hbm [resolvable:$true] %s85
      %s87 = sshll.u32 [#allocation11], 4
      %s88 = int_to_ptr.vmem [resolvable:$true] %s87
      %93 = dma.hbm_to_vmem [thread:$0]  %s86, 256, %s88, [#allocation12], 128, 128, 8
    $region25: #{tpu_custom_call.1} parent=1 // pred_fallthru
      _
    // Predicated region
    $region26: #{tpu_custom_call.1} parent=1 // pred_check
      _
    $region27: #{tpu_custom_call.1} parent=1 // pred_check_branch
      %95 = sbr.rel (0) target = $region29
    $region28: #{tpu_custom_call.1} parent=1 // pred_region
      %97 = dma.done [#allocation3], 256
    $region29: #{tpu_custom_call.1} parent=1 // pred_fallthru
      _
    // Predicated region
    $region30: #{tpu_custom_call.1} parent=1 // pred_check
      _
    $region31: #{tpu_custom_call.1} parent=1 // pred_check_branch
      %99 = sbr.rel (0) target = $region33
    $region32: #{tpu_custom_call.1} parent=1 // pred_region
      %101 = dma.done [#allocation6], 256
    $region33: #{tpu_custom_call.1} parent=1 // pred_fallthru
      _
    // Predicated region
    $region34: #{tpu_custom_call.1} parent=1 // pred_check
      _
    $region35: #{tpu_custom_call.1} parent=1 // pred_check_branch
      %103 = sbr.rel (0) target = $region37
    $region36: #{tpu_custom_call.1} parent=1 // pred_region
      %105 = dma.done [#allocation6], 256
    $region37: #{tpu_custom_call.1} parent=1 // pred_fallthru
      _
    // Predicated region
    $region38: #{tpu_custom_call.1} parent=1 // pred_check
      _
    $region39: #{tpu_custom_call.1} parent=1 // pred_check_branch
      %107 = sbr.rel (0) target = $region41
    $region40: #{tpu_custom_call.1} parent=1 // pred_region
      %109 = dma.done [#allocation9], 256
    $region41: #{tpu_custom_call.1} parent=1 // pred_fallthru
      _
    // Predicated region
    $region42: #{tpu_custom_call.1} parent=1 // pred_check
      _
    $region43: #{tpu_custom_call.1} parent=1 // pred_check_branch
      %111 = sbr.rel (0) target = $region45
    $region44: #{tpu_custom_call.1} parent=1 // pred_region
      %113 = dma.done [#allocation9], 256
    $region45: #{tpu_custom_call.1} parent=1 // pred_fallthru
      _
    // Predicated region
    $region46: #{tpu_custom_call.1} parent=1 // pred_check
      _
    $region47: #{tpu_custom_call.1} parent=1 // pred_check_branch
      %115 = sbr.rel (0) target = $region49
    $region48: #{tpu_custom_call.1} parent=1 // pred_region
      %117 = dma.done [#allocation12], 256
    $region49: #{tpu_custom_call.1} parent=1 // pred_fallthru
      _
    %p118 = scmp.eq.s32.totalorder 0, 0
    // Predicated region
    $region50: #{tpu_custom_call.1} parent=1 // pred_check
      %p119 = pneg %p118
    $region51: #{tpu_custom_call.1} parent=1 // pred_check_branch
      %121 = sbr.rel (%p119) target = $region53
    $region52: #{tpu_custom_call.1} parent=1 // pred_region
      %122 = vst [vmem:[#allocation13] sm:$0xff] 0.0
    $region53: #{tpu_custom_call.1} parent=1 // pred_fallthru
      _
    %v123 = vld [vmem:[#allocation2] sm:$0xff]
    %v124 = vld [vmem:[#allocation2 + $0x8] sm:$0xff]
    %v125 = vld [vmem:[#allocation8] sm:$0xff]
    %v126 = vld [vmem:[#allocation8 + $0x8] sm:$0xff]
    %v127 = vsub.f32 %v123, %v125
    %v128 = vsub.f32 %v124, %v126
    %v129 = vmul.f32 %v127, %v127
    %v130 = vmul.f32 %v128, %v128
    %v131 = vadd.f32 %v129, %v130
    %v132 = vmul.f32 %v131, 0.5
    %v133 = vadd.f32 %v132, 0.0
    %v134 = vld [vmem:[#allocation5] sm:$0xff]
    %v135 = vld [vmem:[#allocation5 + $0x8] sm:$0xff]
    %v136 = vld [vmem:[#allocation10] sm:$0xff]
    %v137 = vld [vmem:[#allocation10 + $0x8] sm:$0xff]
    %v138 = vsub.f32 %v134, %v136
    %v139 = vsub.f32 %v135, %v137
    %v140 = vmul.f32 %v138, %v138
    %v141 = vmul.f32 %v139, %v139
    %v142 = vadd.f32 %v140, %v141
    %v143 = vadd.f32 %v133, %v142
    %v144 = vld [vmem:[#allocation7] sm:$0xff]
    %v145 = vld [vmem:[#allocation7 + $0x8] sm:$0xff]
    %v146 = vld [vmem:[#allocation11] sm:$0xff]
    %v147 = vld [vmem:[#allocation11 + $0x8] sm:$0xff]
    %v148 = vsub.f32 %v144, %v146
    %v149 = vsub.f32 %v145, %v147
    %v150 = vmul.f32 %v148, %v148
    %v151 = vmul.f32 %v149, %v149
    %v152 = vadd.f32 %v150, %v151
    %v153 = vmul.f32 %v152, 2.0
    %v154 = vadd.f32 %v143, %v153
    %v155 = vld [vmem:[#allocation13] sm:$0xff]
    %v156 = vadd.f32 %v155, %v154
    %157 = vst [vmem:[#allocation13] sm:$0xff] %v156
    // Predicated region
    $region54: #{tpu_custom_call.1} parent=1 // pred_check
      _
    $region55: #{tpu_custom_call.1} parent=1 // pred_check_branch
      %159 = sbr.rel (0) target = $region57
    $region56: #{tpu_custom_call.1} parent=1 // pred_region
      %161 = vsyncadd [#allocation4], 0
      %s163 = sshll.u32 [#allocation13], 4
      %s164 = int_to_ptr.vmem [resolvable:$true] %s163
      %s165 = sshll.u32 %s6, 4
      %s166 = int_to_ptr.hbm [resolvable:$true] %s165
      %168 = dma.vmem_to_hbm [thread:$0]  %s164, 128, %s166, [#allocation4]
    $region57: #{tpu_custom_call.1} parent=1 // pred_fallthru
      _
    // Predicated region
    $region58: #{tpu_custom_call.1} parent=1 // pred_check
      _
    $region59: #{tpu_custom_call.1} parent=1 // pred_check_branch
      %170 = sbr.rel (0) target = $region61
    $region60: #{tpu_custom_call.1} parent=1 // pred_region
      %172 = dma.done [#allocation4], 128
    $region61: #{tpu_custom_call.1} parent=1 // pred_fallthru
      _
    %173 = vsyncpa [#allocation3], 1
    %174 = vsyncpa [#allocation6], 1
    %175 = vsyncpa [#allocation9], 1
    %176 = vsyncpa [#allocation12], 1
    %177 = vsyncpa [#allocation4], 1

</llo_original>
